<compile_context>
chip_gen: v7x
topology: tpu7x:2x2x1
jax: 0.10.0
libtpu: 0.0.40
codegen_flags: <defaults>
</compile_context>

<pallas_src>
import jax
import jax.numpy as jnp
from jax.experimental import pallas as pl
from jax.experimental.pallas import tpu as pltpu


def _round_up(x, m):
    return (x + m - 1) // m * m


def _divisor_tile(dim, unit, target):
    """Largest tile = unit*d with d | (dim // unit) and tile <= max(target, unit).

    `dim` must already be a multiple of `unit`.  Divisor tiles mean the grid
    covers the (aligned) array exactly -> no padding to tile multiples.
    """
    n = dim // unit
    target = max(target, unit)
    best = 1
    for d in range(1, n + 1):
        if n % d == 0 and d * unit <= target:
            best = d
    return best * unit


def float16_module_kernel(x_ref, w_ref, b_ref, o_ref):
    k = pl.program_id(2)

    @pl.when(k == 0)
    def _init():
        o_ref[...] = jnp.zeros_like(o_ref)

    # Wrapped half module: bf16 matmul on the MXU, f32 accumulation directly into
    # the VMEM-resident output block (its block index (i, j) is constant across k).
    o_ref[...] += jnp.dot(x_ref[...], w_ref[...], preferred_element_type=jnp.float32)

    @pl.when(k == pl.num_programs(2) - 1)
    def _epilogue():
        # Bias once (not per K step), round through bf16 (the half module's output
        # dtype), then float16_to_fp32 back to fp32 for the pipeline last stage.
        y = o_ref[...] + b_ref[...].astype(jnp.float32)
        o_ref[...] = y.astype(jnp.bfloat16).astype(jnp.float32)


def float16_module_forward(x_f32, w_bf16, b_bf16, *, tm=512, tn=1024, tk=1024):
    """x_f32: [M, K] fp32, w_bf16: [K, N] bf16, b_bf16: [1, N] bf16 -> [M, N] fp32."""
    M, K = x_f32.shape
    K2, N = w_bf16.shape
    assert K2 == K and b_bf16.shape == (1, N)

    # --- fp32_to_float16 (first pipeline stage): materialize bf16 x once so the
    # kernel streams half the bytes for the re-read operand. ---
    xb = x_f32.astype(jnp.bfloat16)

    # Hardware alignment only (16 sublanes for bf16 rows, 128 lanes).
    Mp = _round_up(M, 16)
    Kp = _round_up(K, 128)
    Np = _round_up(N, 128)

    if (Mp, Kp) != (M, K):
        xb = jnp.pad(xb, ((0, Mp - M), (0, Kp - K)))
    wp = w_bf16 if (Kp, Np) == (K, N) else jnp.pad(w_bf16, ((0, Kp - K), (0, Np - N)))
    bp = b_bf16 if Np == N else jnp.pad(b_bf16, ((0, 0), (0, Np - N)))

    # Divisor tiles: grid covers the aligned arrays exactly (no tile-multiple padding).
    tm = _divisor_tile(Mp, 16, min(tm, Mp))
    tn = _divisor_tile(Np, 128, min(tn, Np))
    tk = _divisor_tile(Kp, 128, min(tk, Kp))

    # Megacore: make sure there are >= 2 blocks on a parallel axis when possible,
    # splitting whichever axis adds the least HBM re-streaming.
    gi, gj = Mp // tm, Np // tn
    if gi * gj < 2:
        tm_half = _divisor_tile(Mp, 16, Mp // 2) if Mp >= 32 else None
        tn_half = _divisor_tile(Np, 128, Np // 2) if Np >= 256 else None
        cost_m = (Mp // tm_half - 1) * (2 * Kp * Np) if tm_half else None  # W re-read
        cost_n = (Np // tn_half - 1) * (2 * Mp * Kp) if tn_half else None  # x re-read
        if cost_m is not None and (cost_n is None or cost_m <= cost_n):
            tm = tm_half
        elif cost_n is not None:
            tn = tn_half

    grid = (Mp // tm, Np // tn, Kp // tk)

    # Per-step VMEM footprint: double-buffered bf16 inputs + bias, double-buffered
    # f32 output block (which doubles as the accumulator).
    footprint = 2 * (tm * tk * 2 + tk * tn * 2 + tn * 2) + 2 * (tm * tn * 4)
    try:
        phys_vmem = pltpu.get_tpu_info().vmem_capacity_bytes
    except Exception:
        phys_vmem = 64 << 20  # conservative (v7x per-TC size)
    vmem_cap = (phys_vmem * 3) // 4  # leave headroom for compiler-internal scratch
    vmem_limit = int(min(max(footprint + (4 << 20), 32 << 20), vmem_cap))

    # Truthful cost estimate including operand re-streaming.
    cost = pl.CostEstimate(
        flops=2 * Mp * Kp * Np,
        transcendentals=0,
        bytes_accessed=(
            2 * Mp * Kp * (Np // tn)        # x re-streamed once per j block
            + 2 * Kp * Np * (Mp // tm)      # W re-streamed once per i block
            + 2 * Np * (Mp // tm)           # bias
            + 4 * Mp * Np                   # fp32 output
        ),
    )

    out = pl.pallas_call(
        float16_module_kernel,
        out_shape=jax.ShapeDtypeStruct((Mp, Np), jnp.float32),
        grid=grid,
        in_specs=[
            pl.BlockSpec((tm, tk), lambda i, j, k: (i, k)),   # x (bf16)
            pl.BlockSpec((tk, tn), lambda i, j, k: (k, j)),   # W (bf16)
            pl.BlockSpec((1, tn), lambda i, j, k: (0, j)),    # bias (bf16)
        ],
        out_specs=pl.BlockSpec((tm, tn), lambda i, j, k: (i, j)),
        compiler_params=pltpu.CompilerParams(
            dimension_semantics=("parallel", "parallel", "arbitrary"),
            vmem_limit_bytes=vmem_limit,
        ),
        cost_estimate=cost,
    )(xb, wp, bp)

    if (Mp, Np) != (M, N):
        out = out[:M, :N]
    return out


def _reference(x, w, b):
    # fp32 -> bf16 cast-in, bf16 linear (f32 acc), bf16 activation, cast-out to fp32.
    y = jnp.dot(x.astype(jnp.bfloat16), w, preferred_element_type=jnp.float32)
    y = y + b.astype(jnp.float32)
    return y.astype(jnp.bfloat16).astype(jnp.float32)


if __name__ == "__main__":
    key = jax.random.PRNGKey(0)
    kx, kw, kb, kx2, kw2, kb2 = jax.random.split(key, 6)

    # Small shapes consistent with the module: batch=2, seq=8, hidden=32.
    batch, seq, hidden, out_dim = 2, 8, 32, 32
    M, K, N = batch * seq, hidden, out_dim

    x = jax.random.normal(kx, (M, K), dtype=jnp.float32)                       # fp32 pipeline input
    w = (jax.random.normal(kw, (K, N), dtype=jnp.float32) * 0.02).astype(jnp.bfloat16)
    b = (jax.random.normal(kb, (1, N), dtype=jnp.float32) * 0.02).astype(jnp.bfloat16)

    out = jax.block_until_ready(float16_module_forward(x, w, b))
    ref = _reference(x, w, b)
    assert out.dtype == jnp.float32
    assert out.shape == (M, N)
    assert jnp.allclose(out, ref, atol=1e-2, rtol=1e-2)

    # Secondary check exercising the multi-tile grid, divisor-tile selection
    # (N=384 -> tn=384, no tile padding), megacore M split, and the K epilogue.
    M2, K2, N2 = 512, 1024, 384
    x2 = jax.random.normal(kx2, (M2, K2), dtype=jnp.float32)
    w2 = (jax.random.normal(kw2, (K2, N2), dtype=jnp.float32) * 0.02).astype(jnp.bfloat16)
    b2 = (jax.random.normal(kb2, (1, N2), dtype=jnp.float32) * 0.02).astype(jnp.bfloat16)

    out2 = jax.block_until_ready(float16_module_forward(x2, w2, b2))
    ref2 = _reference(x2, w2, b2)
    assert out2.dtype == jnp.float32
    assert out2.shape == (M2, N2)
    assert jnp.allclose(out2, ref2, atol=2e-2, rtol=2e-2)

    print("KERNEL_OK")
</pallas_src>

<mosaic_0001>
module attributes {stable_mosaic.version = 11 : i64} {
  func.func @float16_module_kernel(%arg0: i32, %arg1: i32, %arg2: i32, %arg3: memref<16x128xbf16, #tpu.memory_space<vmem>>, %arg4: memref<128x128xbf16, #tpu.memory_space<vmem>>, %arg5: memref<1x128xbf16, #tpu.memory_space<vmem>>, %arg6: memref<16x128xf32, #tpu.memory_space<vmem>>) attributes {dimension_semantics = [#tpu.dimension_semantics<parallel>, #tpu.dimension_semantics<parallel>, #tpu.dimension_semantics<arbitrary>], iteration_bounds = array<i64: 1, 1, 1>, scalar_prefetch = 0 : i64, scratch_operands = 0 : i64, tpu.core_type = #tpu.core_type<tc>, window_params = [{transform_indices = @transform_0, window_bounds = array<i64: 16, 128>}, {transform_indices = @transform_1, window_bounds = array<i64: 128, 128>}, {transform_indices = @transform_2, window_bounds = array<i64: 1, 128>}, {transform_indices = @transform_3, window_bounds = array<i64: 16, 128>}]} {
    %c0_i32 = arith.constant 0 : i32
    %0 = arith.cmpi eq, %arg2, %c0_i32 : i32
    %1 = arith.extui %0 : i1 to i32
    %c0_i32_0 = arith.constant 0 : i32
    %2 = arith.cmpi ne, %1, %c0_i32_0 : i32
    scf.if %2 {
      %cst_10 = arith.constant 0.000000e+00 : f32
      %12 = vector.broadcast %cst_10 : f32 to vector<16x128xf32>
      %c0_11 = arith.constant 0 : index
      %c0_12 = arith.constant 0 : index
      %13 = vector.load %arg6[%c0_11, %c0_12] : memref<16x128xf32, #tpu.memory_space<vmem>>, vector<16x128xf32>
      tpu.vector_store %arg6[%c0_11, %c0_12], %12 {strides = array<i32>} : memref<16x128xf32, #tpu.memory_space<vmem>>, vector<16x128xf32>,
    } else {
    }
    %c0 = arith.constant 0 : index
    %c0_1 = arith.constant 0 : index
    %3 = vector.load %arg6[%c0, %c0_1] : memref<16x128xf32, #tpu.memory_space<vmem>>, vector<16x128xf32>
    %c0_2 = arith.constant 0 : index
    %c0_3 = arith.constant 0 : index
    %4 = vector.load %arg3[%c0_2, %c0_3] : memref<16x128xbf16, #tpu.memory_space<vmem>>, vector<16x128xbf16>
    %c0_4 = arith.constant 0 : index
    %c0_5 = arith.constant 0 : index
    %5 = vector.load %arg4[%c0_4, %c0_5] : memref<128x128xbf16, #tpu.memory_space<vmem>>, vector<128x128xbf16>
    %cst = arith.constant dense<0.000000e+00> : vector<16x128xf32>
    %6 = tpu.matmul %4, %5, %cst {dimension_numbers = #tpu.dot_dimension_numbers<[1], [0], [0], [1], [0, 0, 1, 1], [], []>} : vector<16x128xbf16>, vector<128x128xbf16>, vector<16x128xf32> -> vector<16x128xf32>
    %7 = arith.addf %3, %6 : vector<16x128xf32>
    %c0_6 = arith.constant 0 : index
    %c0_7 = arith.constant 0 : index
    %8 = vector.load %arg6[%c0_6, %c0_7] : memref<16x128xf32, #tpu.memory_space<vmem>>, vector<16x128xf32>
    tpu.vector_store %arg6[%c0_6, %c0_7], %7 {strides = array<i32>} : memref<16x128xf32, #tpu.memory_space<vmem>>, vector<16x128xf32>,
    %c0_i32_8 = arith.constant 0 : i32
    %9 = arith.cmpi eq, %arg2, %c0_i32_8 : i32
    %10 = arith.extui %9 : i1 to i32
    %c0_i32_9 = arith.constant 0 : i32
    %11 = arith.cmpi ne, %10, %c0_i32_9 : i32
    scf.if %11 {
      %c0_10 = arith.constant 0 : index
      %c0_11 = arith.constant 0 : index
      %12 = vector.load %arg6[%c0_10, %c0_11] : memref<16x128xf32, #tpu.memory_space<vmem>>, vector<16x128xf32>
      %c0_12 = arith.constant 0 : index
      %c0_13 = arith.constant 0 : index
      %13 = vector.load %arg5[%c0_12, %c0_13] : memref<1x128xbf16, #tpu.memory_space<vmem>>, vector<1x128xbf16>
      %14 = arith.extf %13 : vector<1x128xbf16> to vector<1x128xf32>
      %15 = vector.broadcast %14 : vector<1x128xf32> to vector<16x128xf32>
      %16 = arith.addf %12, %15 : vector<16x128xf32>
      %17 = arith.truncf %16 : vector<16x128xf32> to vector<16x128xbf16>
      %18 = arith.extf %17 : vector<16x128xbf16> to vector<16x128xf32>
      %c0_14 = arith.constant 0 : index
      %c0_15 = arith.constant 0 : index
      %19 = vector.load %arg6[%c0_14, %c0_15] : memref<16x128xf32, #tpu.memory_space<vmem>>, vector<16x128xf32>
      tpu.vector_store %arg6[%c0_14, %c0_15], %18 {strides = array<i32>} : memref<16x128xf32, #tpu.memory_space<vmem>>, vector<16x128xf32>,
    } else {
    }
    return
  }
  func.func @transform_0(%arg0: i32, %arg1: i32, %arg2: i32) -> (i32, i32) {
    %c0_i32 = arith.constant 0 : i32
    return %arg0, %arg2 : i32, i32
  }
  func.func @transform_1(%arg0: i32, %arg1: i32, %arg2: i32) -> (i32, i32) {
    %c0_i32 = arith.constant 0 : i32
    return %arg2, %arg1 : i32, i32
  }
  func.func @transform_2(%arg0: i32, %arg1: i32, %arg2: i32) -> (i32, i32) {
    %c0_i32 = arith.constant 0 : i32
    %c0_i32_0 = arith.constant 0 : i32
    return %c0_i32, %arg1 : i32, i32
  }
  func.func @transform_3(%arg0: i32, %arg1: i32, %arg2: i32) -> (i32, i32) {
    %c0_i32 = arith.constant 0 : i32
    return %arg0, %arg1 : i32, i32
  }
}

</mosaic_0001>

<llo_original>
// kernel: tpu_custom_call.1
$region0: #{tpu_custom_call.1}
  #allocation0 [shape = 'u32[]', space=smem, size = 0x4, offset = 0x4, fixed_abs, tag = 'smem constant byte address 0x4 - core index']
  #allocation1 [shape = 'u32[144,128]{1,0:T(1,128)}', space=vmem, size = 0x12000, scoped, tag = 'internal scratch']
  %s0 = inlined_call_operand.hbm [shape: bf16[16,128], index: 0, kind: input, shape index: {}]
  %s1 = inlined_call_operand.hbm [shape: bf16[128,128], index: 1, kind: input, shape index: {}]
  %s2 = inlined_call_operand.vmem [shape: bf16[1,128], index: 2, kind: input, shape index: {}]
  %s3 = inlined_call_operand.hbm [shape: f32[16,128], index: 3, kind: output, shape index: {}]
  %s4 = sld [smem:[#allocation0]]
  $region38: #{tpu_custom_call.1} parent=0
    _
  %s6 = ssub.s32 1, %s4
  %s7 = scalar_select 0, %s6, %s4
  $region1: #{tpu_custom_call.1} parent=0
    #allocation2 [shape = 'u8[4096]{0}', space=vmem, size = 0x1000, scoped, tag = 'input window, operand 0, single buffered']
    #allocation3 [shape = 's32[1]{0}', space=sflag, size = 0x4, scoped, tag = 'scoped memory for tpu_custom_call.1']
    #allocation4 [shape = 's32[1]{0}', space=sflag, size = 0x4, scoped, tag = 'scoped memory for tpu_custom_call.1']
    #allocation5 [shape = 'u8[32768]{0}', space=vmem, size = 0x8000, scoped, tag = 'input window, operand 1, single buffered']
    #allocation6 [shape = 's32[1]{0}', space=sflag, size = 0x4, scoped, tag = 'scoped memory for tpu_custom_call.1']
    #allocation7 [shape = 'u8[8192]{0}', space=vmem, size = 0x2000, scoped, tag = 'output window, operand 0, single buffered']
    %8 = vsyncpa [#allocation3], 0
    %9 = vsyncpa [#allocation6], 0
    %10 = vsyncpa [#allocation4], 0
    // Predicated region
    $region2: #{tpu_custom_call.1} parent=1 // pred_check
      _
    $region3: #{tpu_custom_call.1} parent=1 // pred_check_branch
      %12 = sbr.rel (0) target = $region5
    $region4: #{tpu_custom_call.1} parent=1 // pred_region
      %s14 = ssub.s32 128, 128
      %15 = vsyncadd [#allocation3], %s14
      %s16 = sshll.u32 [#allocation2], 4
      %s17 = int_to_ptr.vmem [resolvable:$true] %s16
      %22 = dma.hbm_to_vmem [thread:$0]  %s0, 128, %s17, [#allocation3], 64, 64, 4
    $region5: #{tpu_custom_call.1} parent=1 // pred_fallthru
      _
    // Predicated region
    $region6: #{tpu_custom_call.1} parent=1 // pred_check
      _
    $region7: #{tpu_custom_call.1} parent=1 // pred_check_branch
      %24 = sbr.rel (0) target = $region9
    $region8: #{tpu_custom_call.1} parent=1 // pred_region
      %s26 = ssub.s32 1024, 1024
      %27 = vsyncadd [#allocation6], %s26
      %s28 = sshll.u32 [#allocation5], 4
      %s29 = int_to_ptr.vmem [resolvable:$true] %s28
      %34 = dma.hbm_to_vmem [thread:$0]  %s1, 1024, %s29, [#allocation6], 64, 64, 4
    $region9: #{tpu_custom_call.1} parent=1 // pred_fallthru
      _
    // Predicated region
    $region10: #{tpu_custom_call.1} parent=1 // pred_check
      _
    $region11: #{tpu_custom_call.1} parent=1 // pred_check_branch
      %36 = sbr.rel (0) target = $region13
    $region12: #{tpu_custom_call.1} parent=1 // pred_region
      _
    $region13: #{tpu_custom_call.1} parent=1 // pred_fallthru
      _
    // Predicated region
    $region14: #{tpu_custom_call.1} parent=1 // pred_check
      _
    $region15: #{tpu_custom_call.1} parent=1 // pred_check_branch
      %38 = sbr.rel (0) target = $region17
    $region16: #{tpu_custom_call.1} parent=1 // pred_region
      %39 = dma.done [#allocation3], 128
    $region17: #{tpu_custom_call.1} parent=1 // pred_fallthru
      _
    // Predicated region
    $region18: #{tpu_custom_call.1} parent=1 // pred_check
      _
    $region19: #{tpu_custom_call.1} parent=1 // pred_check_branch
      %41 = sbr.rel (0) target = $region21
    $region20: #{tpu_custom_call.1} parent=1 // pred_region
      %42 = dma.done [#allocation6], 1024
    $region21: #{tpu_custom_call.1} parent=1 // pred_fallthru
      _
    %p44 = scmp.eq.s32.totalorder 0, 0
    // Predicated region
    $region22: #{tpu_custom_call.1} parent=1 // pred_check
      %p45 = pneg %p44
    $region23: #{tpu_custom_call.1} parent=1 // pred_check_branch
      %47 = sbr.rel (%p45) target = $region25
    $region24: #{tpu_custom_call.1} parent=1 // pred_region
      %48 = vst [vmem:[#allocation7] sm:$0xff] 0.0
      %49 = vst [vmem:[#allocation7 + $0x8] sm:$0xff] 0.0
    $region25: #{tpu_custom_call.1} parent=1 // pred_fallthru
      _
    %v50 = vld [vmem:[#allocation7] sm:$0xff]
    %v51 = vld [vmem:[#allocation7 + $0x8] sm:$0xff]
    %v52 = vld [vmem:[#allocation2] sm:$0xf]
    %v53 = vld [vmem:[#allocation2 + $0x4] sm:$0xf]
    %v54 = vld [vmem:[#allocation5] sm:$0xf]
    %v55 = vld [vmem:[#allocation5 + $0x4] sm:$0xf]
    %v56 = vld [vmem:[#allocation5 + $0x8] sm:$0xf]
    %v57 = vld [vmem:[#allocation5 + $0xc] sm:$0xf]
    %v58 = vld [vmem:[#allocation5 + $0x10] sm:$0xf]
    %v59 = vld [vmem:[#allocation5 + $0x14] sm:$0xf]
    %v60 = vld [vmem:[#allocation5 + $0x18] sm:$0xf]
    %v61 = vld [vmem:[#allocation5 + $0x1c] sm:$0xf]
    %v62 = vld [vmem:[#allocation5 + $0x20] sm:$0xf]
    %v63 = vld [vmem:[#allocation5 + $0x24] sm:$0xf]
    %v64 = vld [vmem:[#allocation5 + $0x28] sm:$0xf]
    %v65 = vld [vmem:[#allocation5 + $0x2c] sm:$0xf]
    %v66 = vld [vmem:[#allocation5 + $0x30] sm:$0xf]
    %v67 = vld [vmem:[#allocation5 + $0x34] sm:$0xf]
    %v68 = vld [vmem:[#allocation5 + $0x38] sm:$0xf]
    %v69 = vld [vmem:[#allocation5 + $0x3c] sm:$0xf]
    %v72 = vunpack.c.l.b16 %v52
    %v73 = vunpack.c.l.b16 %v53
    %v74 = vpack.c.b16 %v73, %v72
    %v92 = vunpack.c.l.b16 %v54
    %v93 = vunpack.c.l.b16 %v55
    %v94 = vunpack.c.l.b16 %v56
    %v95 = vunpack.c.l.b16 %v57
    %v96 = vunpack.c.l.b16 %v58
    %v97 = vunpack.c.l.b16 %v59
    %v98 = vunpack.c.l.b16 %v60
    %v99 = vunpack.c.l.b16 %v61
    %v100 = vunpack.c.l.b16 %v62
    %v101 = vunpack.c.l.b16 %v63
    %v102 = vunpack.c.l.b16 %v64
    %v103 = vunpack.c.l.b16 %v65
    %v104 = vunpack.c.l.b16 %v66
    %v105 = vunpack.c.l.b16 %v67
    %v106 = vunpack.c.l.b16 %v68
    %v107 = vunpack.c.l.b16 %v69
    %v108 = vpack.c.b16 %v93, %v92
    %v109 = vpack.c.b16 %v95, %v94
    %v110 = vpack.c.b16 %v97, %v96
    %v111 = vpack.c.b16 %v99, %v98
    %v112 = vpack.c.b16 %v101, %v100
    %v113 = vpack.c.b16 %v103, %v102
    %v114 = vpack.c.b16 %v105, %v104
    %v115 = vpack.c.b16 %v107, %v106
    %124 = vmatprep.subr.bf16.mxu0 0
    %125 = vmatpush1.bf16.msra.mxu0 %v108
    %126 = vmatprep.subr.bf16.mxu0 0
    %127 = vmatpush1.bf16.msra.mxu0 %v109
    %128 = vmatprep.subr.bf16.mxu0 0
    %129 = vmatpush1.bf16.msra.mxu0 %v110
    %130 = vmatprep.subr.bf16.mxu0 0
    %131 = vmatpush1.bf16.msra.mxu0 %v111
    %132 = vmatprep.subr.bf16.mxu0 0
    %133 = vmatpush1.bf16.msra.mxu0 %v112
    %134 = vmatprep.subr.bf16.mxu0 0
    %135 = vmatpush1.bf16.msra.mxu0 %v113
    %136 = vmatprep.subr.bf16.mxu0 0
    %137 = vmatpush1.bf16.msra.mxu0 %v114
    %138 = vmatprep.subr.bf16.mxu0 0
    %139 = vmatpush1.bf16.msra.mxu0 %v115
    %140 = vmatprep.subr.bf16.mxu0 0
    %141 = vmatpush1.bf16.msra.mxu0 0
    %142 = vmatprep.subr.bf16.mxu0 0
    %143 = vmatpush1.bf16.msra.mxu0 0
    %144 = vmatprep.subr.bf16.mxu0 0
    %145 = vmatpush1.bf16.msra.mxu0 0
    %146 = vmatprep.subr.bf16.mxu0 0
    %147 = vmatpush1.bf16.msra.mxu0 0
    %148 = vmatprep.subr.bf16.mxu0 0
    %149 = vmatpush1.bf16.msra.mxu0 0
    %150 = vmatprep.subr.bf16.mxu0 0
    %151 = vmatpush1.bf16.msra.mxu0 0
    %152 = vmatprep.subr.bf16.mxu0 0
    %153 = vmatpush1.bf16.msra.mxu0 0
    %154 = vmatprep.subr.bf16.mxu0 0
    %155 = vmatpush1.bf16.msra.mxu0 0
    %156 = vmatprep.mubr.bf16.mxu0 0
    %157 = vmatmul.mubr.bf16.gmra.mrb[0].mxu0 %v74
    %v158 = vpop.f32.mrb[0].mxu0
    %v159 = vadd.f32 0.0, %v158
    %v160 = vpop.f32.mrb[0].mxu0
    %v161 = vpop.f32.mrb[0].mxu0
    %v162 = vadd.f32 0.0, %v161
    %v163 = vpop.f32.mrb[0].mxu0
    %164 = vdwg.mxu0
    %v165 = vadd.f32 %v50, %v159
    %v166 = vadd.f32 %v51, %v162
    %167 = vst [vmem:[#allocation7] sm:$0xff] %v165
    %168 = vst [vmem:[#allocation7 + $0x8] sm:$0xff] %v166
    // Predicated region
    $region26: #{tpu_custom_call.1} parent=1 // pred_check
      %p169 = pneg %p44
    $region27: #{tpu_custom_call.1} parent=1 // pred_check_branch
      %171 = sbr.rel (%p169) target = $region29
    $region28: #{tpu_custom_call.1} parent=1 // pred_region
      %v172 = vld [vmem:[#allocation7] sm:$0xff]
      %v173 = vld [vmem:[#allocation7 + $0x8] sm:$0xff]
      %v174 = vld [vmem:[%s2] sm:$0x1]
      %v175 = vunpack.c.l.bf16 %v174
      %v176 = vlaneseq
      %v177 = vshrl.u32 %v176, 7
      %v178 = vsub.s32 0, %v177
      %v179 = vrot.slane %v175, %v178
      %v180 = vadd.f32 %v172, %v179
      %v181 = vadd.f32 %v173, %v179
      %v182 = vpack.c.bf16 %v181, %v180
      %v183 = vunpack.c.l.bf16 %v182
      %v184 = vunpack.c.h.bf16 %v182
      %185 = vst [vmem:[#allocation7] sm:$0xff] %v183
      %186 = vst [vmem:[#allocation7 + $0x8] sm:$0xff] %v184
    $region29: #{tpu_custom_call.1} parent=1 // pred_fallthru
      _
    // Predicated region
    $region30: #{tpu_custom_call.1} parent=1 // pred_check
      _
    $region31: #{tpu_custom_call.1} parent=1 // pred_check_branch
      %188 = sbr.rel (0) target = $region33
    $region32: #{tpu_custom_call.1} parent=1 // pred_region
      %s190 = ssub.s32 256, 256
      %191 = vsyncadd [#allocation4], %s190
      %s192 = sshll.u32 [#allocation7], 4
      %s193 = int_to_ptr.vmem [resolvable:$true] %s192
      %198 = dma.vmem_to_hbm [thread:$0]  %s193, 256, %s3, [#allocation4], 128, 128, 8
    $region33: #{tpu_custom_call.1} parent=1 // pred_fallthru
      _
    // Predicated region
    $region34: #{tpu_custom_call.1} parent=1 // pred_check
      _
    $region35: #{tpu_custom_call.1} parent=1 // pred_check_branch
      %200 = sbr.rel (0) target = $region37
    $region36: #{tpu_custom_call.1} parent=1 // pred_region
      %201 = dma.done [#allocation4], 256
    $region37: #{tpu_custom_call.1} parent=1 // pred_fallthru
      _
    %202 = vsyncpa [#allocation3], 1
    %203 = vsyncpa [#allocation6], 1
    %204 = vsyncpa [#allocation4], 1

</llo_original>
